<compile_context>
chip_gen: v7x
topology: tpu7x:2x2x1
jax: 0.10.0
libtpu: 0.0.40
codegen_flags: <defaults>
</compile_context>

<pallas_src>
import functools
import math

import jax
import jax.numpy as jnp
from jax.experimental import pallas as pl
from jax.experimental.pallas import tpu as pltpu


def _round_up(v, m):
    return ((v + m - 1) // m) * m


def _pick_batch_block(batch, node):
    """How many batch elements are folded into each grid step's matmul M dim."""
    target_rows = 256                       # fills v6e/v7x MXU M; 2x v5e tile
    bb = max(1, min(batch, -(-target_rows // node)))
    # keep >= 2 parallel grid blocks (v7x has 2 TensorCores) once there is
    # enough total work; otherwise fold the whole batch into one invocation.
    if batch >= 2 and batch * node >= 2 * target_rows:
        bb = min(bb, batch // 2)

    def _ok(b):
        # must divide the batch; a block that does not span the full array must
        # keep the row (sublane) dimension 8-aligned.
        return batch % b == 0 and (b == batch or (b * node) % 8 == 0)

    while bb > 1 and not _ok(bb):
        bb -= 1
    if not _ok(bb):
        bb = batch                          # fall back to one full-batch block
    return bb


def _gcrn_cell_kernel(x_ref, st_ref, sup_ref, wg_ref, wuh_ref, b_ref, h_ref):
    # Shapes (all static):
    #   x_ref  : (bb*N, Din)  input features
    #   st_ref : (bb*N, H)    state
    #   sup_ref: (N, N)       support, bf16
    #   wg_ref : (K, C, Fo)   fused [Wz | Wr | Wux (state rows zeroed) | 0-pad], bf16
    #   wuh_ref: (K, H, H)    update weights applied to (z*state), bf16
    #   b_ref  : (1, Fo)      fused bias [bz | br | bu | 0-pad], f32
    #   h_ref  : (bb*N, H)    output
    N = sup_ref.shape[0]
    M, _ = x_ref.shape
    H = st_ref.shape[1]
    K = wg_ref.shape[0]
    Fo = wg_ref.shape[2]
    bb = M // N

    S = sup_ref[...]                                   # bf16 (N, N)
    x = x_ref[...].astype(jnp.float32)                 # (M, Din)
    st = st_ref[...].astype(jnp.float32)               # (M, H)
    xs = jnp.concatenate([x, st], axis=-1)             # (M, Din+H) built in VMEM

    def prop(feat_f32):
        """Graph propagation S @ feat for each batch element's (N, .) slice."""
        fb = feat_f32.astype(jnp.bfloat16)
        if bb == 1:
            return jnp.dot(S, fb, preferred_element_type=jnp.float32)
        parts = [jnp.dot(S, fb[b * N:(b + 1) * N, :],
                         preferred_element_type=jnp.float32)
                 for b in range(bb)]
        return jnp.concatenate(parts, axis=0)

    def cheb_accumulate(feat0, w_ref, acc):
        """acc += sum_k (T_k @ feat0) @ w_ref[k] via the feature recurrence."""
        c_prev2 = None
        c_prev = None
        for k in range(K):
            if k == 0:
                ck = feat0                              # T_0 = I  (no matmul)
            elif k == 1:
                ck = prop(feat0)                        # T_1 = S
            else:
                ck = 2.0 * prop(c_prev) - c_prev2       # T_k = 2 S T_{k-1} - T_{k-2}
            acc = acc + jnp.dot(ck.astype(jnp.bfloat16), w_ref[k],
                                preferred_element_type=jnp.float32)
            c_prev2, c_prev = c_prev, ck
        return acc

    # fused pre-activation slab: lanes = [ z | r | hc_x(+bu) | pad ]
    acc = jnp.broadcast_to(b_ref[...], (M, Fo)).astype(jnp.float32)
    acc = cheb_accumulate(xs, wg_ref, acc)

    zr = jax.nn.sigmoid(acc[:, :2 * H])
    z = zr[:, :H]
    r = zr[:, H:2 * H]

    # candidate GCN: x-part already accumulated in lanes [2H:3H]; add (z*state) part.
    hc_pre = cheb_accumulate(z * st, wuh_ref, acc[:, 2 * H:3 * H])
    hc = jnp.tanh(hc_pre)

    h = r * st + (1.0 - r) * hc
    h_ref[...] = h.astype(h_ref.dtype)


@functools.partial(jax.jit, static_argnames=("cheb_k",))
def gcrn_cell_pallas(x, state, support, gate_w, gate_b, update_w, update_b,
                     *, cheb_k):
    """x: (B,N,Din), state: (B,N,H), support: (N,N) -> h: (B,N,H)."""
    B, N, Din = x.shape
    H = state.shape[-1]
    C = Din + H
    K = cheb_k
    Fo = _round_up(3 * H, 128)          # lane-dense fused pre-activation width

    # ---- wrapper-side weight plumbing (grid-invariant, plain XLA) ----
    gw = gate_w.reshape(K, C, 2 * H)                    # [z | r] columns
    uw = update_w.reshape(K, C, H)
    wux = uw[:, :Din, :]                                # applied to x rows
    wuh = uw[:, Din:, :]                                # applied to (z*state) rows

    w_fused = jnp.zeros((K, C, Fo), jnp.float32)
    w_fused = w_fused.at[:, :, :2 * H].set(gw)
    w_fused = w_fused.at[:, :Din, 2 * H:3 * H].set(wux)  # state rows stay zero
    w_fused = w_fused.astype(jnp.bfloat16)
    wuh_b = wuh.astype(jnp.bfloat16)

    b_fused = jnp.zeros((1, Fo), jnp.float32)
    b_fused = b_fused.at[0, :2 * H].set(gate_b)
    b_fused = b_fused.at[0, 2 * H:3 * H].set(update_b)

    x2d = x.reshape(B * N, Din)
    st2d = state.reshape(B * N, H)
    sup_b = support.astype(jnp.bfloat16)

    # ---- batch blocking: fold batch into the matmul M dimension ----
    bb = _pick_batch_block(B, N)
    grid = (B // bb,)
    Mb = bb * N

    h2d = pl.pallas_call(
        _gcrn_cell_kernel,
        out_shape=jax.ShapeDtypeStruct((B * N, H), x.dtype),
        grid_spec=pltpu.PrefetchScalarGridSpec(
            num_scalar_prefetch=0,
            grid=grid,
            in_specs=[
                pl.BlockSpec((Mb, Din), lambda i: (i, 0)),      # x
                pl.BlockSpec((Mb, H), lambda i: (i, 0)),        # state
                pl.BlockSpec((N, N), lambda i: (0, 0)),         # support (invariant)
                pl.BlockSpec((K, C, Fo), lambda i: (0, 0, 0)),  # fused weights
                pl.BlockSpec((K, H, H), lambda i: (0, 0, 0)),   # W_uh (z*state path)
                pl.BlockSpec((1, Fo), lambda i: (0, 0)),        # fused bias
            ],
            out_specs=pl.BlockSpec((Mb, H), lambda i: (i, 0)),
        ),
        compiler_params=pltpu.CompilerParams(
            dimension_semantics=("parallel",)),
    )(x2d, st2d, sup_b, w_fused, wuh_b, b_fused)

    return h2d.reshape(B, N, H)


# ------------------------- parameter setup (glue) -------------------------

def _xavier_normal(key, shape):
    fan_out, fan_in = shape[0], shape[1]
    std = math.sqrt(2.0 / (fan_in + fan_out))
    return std * jax.random.normal(key, shape, jnp.float32)


def init_gcrn_params(key, dim_in, dim_out, cheb_k):
    """Same shapes as the PyTorch module (biases randomized to exercise the path)."""
    C = dim_in + dim_out
    kg, ku, kbg, kbu = jax.random.split(key, 4)
    gate_w = _xavier_normal(kg, (cheb_k * C, 2 * dim_out))
    update_w = _xavier_normal(ku, (cheb_k * C, dim_out))
    # PyTorch inits biases to 0; use small random values here so the fused-bias
    # path of the kernel is actually checked against the reference.
    gate_b = 0.1 * jax.random.normal(kbg, (2 * dim_out,), jnp.float32)
    update_b = 0.1 * jax.random.normal(kbu, (dim_out,), jnp.float32)
    return gate_w, gate_b, update_w, update_b


# ---------------------- pure-JAX reference (for check) ---------------------

def _gcn_ref(x, support, w, b, cheb_k):
    N = support.shape[0]
    supp = [jnp.eye(N, dtype=x.dtype), support]
    for _ in range(2, cheb_k):
        supp.append(2.0 * support @ supp[-1] - supp[-2])
    x_g = jnp.concatenate(
        [jnp.einsum('nm,bmc->bnc', s, x) for s in supp], axis=-1)
    return jnp.einsum('bni,io->bno', x_g, w) + b


def gcrn_cell_ref(x, state, support, gate_w, gate_b, update_w, update_b,
                  cheb_k, hidden_dim):
    input_and_state = jnp.concatenate((x, state), axis=-1)
    z_r = jax.nn.sigmoid(_gcn_ref(input_and_state, support,
                                  gate_w, gate_b, cheb_k))
    z, r = z_r[..., :hidden_dim], z_r[..., hidden_dim:]
    candidate = jnp.concatenate((x, z * state), axis=-1)
    hc = jnp.tanh(_gcn_ref(candidate, support, update_w, update_b, cheb_k))
    return r * state + (1.0 - r) * hc


if __name__ == "__main__":
    B, N, DIM_IN, HIDDEN, CHEB_K = 2, 16, 4, 32, 3

    key = jax.random.PRNGKey(0)
    kx, ks, ka, kp = jax.random.split(key, 4)

    x = jax.random.normal(kx, (B, N, DIM_IN), jnp.float32)
    state = jax.random.normal(ks, (B, N, HIDDEN), jnp.float32)
    # synthetic (row-normalized) support matrix
    adj = jnp.abs(jax.random.normal(ka, (N, N), jnp.float32))
    support = adj / jnp.sum(adj, axis=-1, keepdims=True)

    gate_w, gate_b, update_w, update_b = init_gcrn_params(
        kp, DIM_IN, HIDDEN, CHEB_K)

    h = gcrn_cell_pallas(x, state, support, gate_w, gate_b,
                         update_w, update_b, cheb_k=CHEB_K)
    h = jax.block_until_ready(h)

    h_ref = gcrn_cell_ref(x, state, support, gate_w, gate_b,
                          update_w, update_b, CHEB_K, HIDDEN)
    h_ref = jax.block_until_ready(h_ref)

    assert h.shape == (B, N, HIDDEN)
    max_err = float(jnp.max(jnp.abs(h - h_ref)))
    # bf16 MXU operands with f32 accumulation -> slightly looser tolerance.
    assert jnp.allclose(h, h_ref, atol=2e-2, rtol=2e-2), max_err

    print("KERNEL_OK")
</pallas_src>

<mosaic_0001>
module attributes {stable_mosaic.version = 11 : i64} {
  func.func @_gcrn_cell_kernel(%arg0: i32, %arg1: memref<32x4xf32, #tpu.memory_space<vmem>>, %arg2: memref<32x32xf32, #tpu.memory_space<vmem>>, %arg3: memref<16x16xbf16, #tpu.memory_space<vmem>>, %arg4: memref<3x36x128xbf16, #tpu.memory_space<vmem>>, %arg5: memref<3x32x32xbf16, #tpu.memory_space<vmem>>, %arg6: memref<1x128xf32, #tpu.memory_space<vmem>>, %arg7: memref<32x32xf32, #tpu.memory_space<vmem>>) attributes {dimension_semantics = [#tpu.dimension_semantics<parallel>], iteration_bounds = array<i64: 1>, scalar_prefetch = 0 : i64, scratch_operands = 0 : i64, tpu.core_type = #tpu.core_type<tc>, window_params = [{transform_indices = @transform_0, window_bounds = array<i64: 32, 4>}, {transform_indices = @transform_1, window_bounds = array<i64: 32, 32>}, {pipeline_mode = #tpu.pipeline_mode<synchronous>, transform_indices = @transform_2, window_bounds = array<i64: 16, 16>}, {pipeline_mode = #tpu.pipeline_mode<synchronous>, transform_indices = @transform_3, window_bounds = array<i64: 3, 36, 128>}, {pipeline_mode = #tpu.pipeline_mode<synchronous>, transform_indices = @transform_4, window_bounds = array<i64: 3, 32, 32>}, {pipeline_mode = #tpu.pipeline_mode<synchronous>, transform_indices = @transform_5, window_bounds = array<i64: 1, 128>}, {transform_indices = @transform_6, window_bounds = array<i64: 32, 32>}]} {
    %c0 = arith.constant 0 : index
    %c0_0 = arith.constant 0 : index
    %0 = vector.load %arg3[%c0, %c0_0] : memref<16x16xbf16, #tpu.memory_space<vmem>>, vector<16x16xbf16>
    %c0_1 = arith.constant 0 : index
    %c0_2 = arith.constant 0 : index
    %1 = vector.load %arg1[%c0_1, %c0_2] : memref<32x4xf32, #tpu.memory_space<vmem>>, vector<32x4xf32>
    %c0_3 = arith.constant 0 : index
    %c0_4 = arith.constant 0 : index
    %2 = vector.load %arg2[%c0_3, %c0_4] : memref<32x32xf32, #tpu.memory_space<vmem>>, vector<32x32xf32>
    %3 = tpu.concatenate %1, %2 in 1 : vector<32x4xf32>, vector<32x32xf32> -> vector<32x36xf32>
    %c0_5 = arith.constant 0 : index
    %c0_6 = arith.constant 0 : index
    %4 = vector.load %arg6[%c0_5, %c0_6] : memref<1x128xf32, #tpu.memory_space<vmem>>, vector<1x128xf32>
    %5 = vector.shape_cast %4 : vector<1x128xf32> to vector<1x128xf32>
    %6 = vector.broadcast %5 : vector<1x128xf32> to vector<32x128xf32>
    %7 = arith.truncf %3 : vector<32x36xf32> to vector<32x36xbf16>
    %c0_7 = arith.constant 0 : index
    %c0_8 = arith.constant 0 : index
    %c0_9 = arith.constant 0 : index
    %8 = vector.load %arg4[%c0_7, %c0_8, %c0_9] : memref<3x36x128xbf16, #tpu.memory_space<vmem>>, vector<1x36x128xbf16>
    %9 = vector.shape_cast %8 : vector<1x36x128xbf16> to vector<36x128xbf16>
    %cst = arith.constant dense<0.000000e+00> : vector<32x128xf32>
    %10 = tpu.matmul %7, %9, %cst {dimension_numbers = #tpu.dot_dimension_numbers<[1], [0], [0], [1], [0, 0, 1, 1], [], []>} : vector<32x36xbf16>, vector<36x128xbf16>, vector<32x128xf32> -> vector<32x128xf32>
    %11 = arith.addf %6, %10 : vector<32x128xf32>
    %12 = arith.truncf %3 : vector<32x36xf32> to vector<32x36xbf16>
    %13 = vector.extract_strided_slice %12 {offsets = [0, 0], sizes = [16, 36], strides = [1, 1]} : vector<32x36xbf16> to vector<16x36xbf16>
    %cst_10 = arith.constant dense<0.000000e+00> : vector<16x36xf32>
    %14 = tpu.matmul %0, %13, %cst_10 {dimension_numbers = #tpu.dot_dimension_numbers<[1], [0], [0], [1], [0, 0, 1, 1], [], []>} : vector<16x16xbf16>, vector<16x36xbf16>, vector<16x36xf32> -> vector<16x36xf32>
    %15 = vector.extract_strided_slice %12 {offsets = [16, 0], sizes = [16, 36], strides = [1, 1]} : vector<32x36xbf16> to vector<16x36xbf16>
    %cst_11 = arith.constant dense<0.000000e+00> : vector<16x36xf32>
    %16 = tpu.matmul %0, %15, %cst_11 {dimension_numbers = #tpu.dot_dimension_numbers<[1], [0], [0], [1], [0, 0, 1, 1], [], []>} : vector<16x16xbf16>, vector<16x36xbf16>, vector<16x36xf32> -> vector<16x36xf32>
    %17 = tpu.concatenate %14, %16 in 0 : vector<16x36xf32>, vector<16x36xf32> -> vector<32x36xf32>
    %18 = arith.truncf %17 : vector<32x36xf32> to vector<32x36xbf16>
    %c1 = arith.constant 1 : index
    %c0_12 = arith.constant 0 : index
    %c0_13 = arith.constant 0 : index
    %19 = vector.load %arg4[%c1, %c0_12, %c0_13] : memref<3x36x128xbf16, #tpu.memory_space<vmem>>, vector<1x36x128xbf16>
    %20 = vector.shape_cast %19 : vector<1x36x128xbf16> to vector<36x128xbf16>
    %cst_14 = arith.constant dense<0.000000e+00> : vector<32x128xf32>
    %21 = tpu.matmul %18, %20, %cst_14 {dimension_numbers = #tpu.dot_dimension_numbers<[1], [0], [0], [1], [0, 0, 1, 1], [], []>} : vector<32x36xbf16>, vector<36x128xbf16>, vector<32x128xf32> -> vector<32x128xf32>
    %22 = arith.addf %11, %21 : vector<32x128xf32>
    %23 = arith.truncf %17 : vector<32x36xf32> to vector<32x36xbf16>
    %24 = vector.extract_strided_slice %23 {offsets = [0, 0], sizes = [16, 36], strides = [1, 1]} : vector<32x36xbf16> to vector<16x36xbf16>
    %cst_15 = arith.constant dense<0.000000e+00> : vector<16x36xf32>
    %25 = tpu.matmul %0, %24, %cst_15 {dimension_numbers = #tpu.dot_dimension_numbers<[1], [0], [0], [1], [0, 0, 1, 1], [], []>} : vector<16x16xbf16>, vector<16x36xbf16>, vector<16x36xf32> -> vector<16x36xf32>
    %26 = vector.extract_strided_slice %23 {offsets = [16, 0], sizes = [16, 36], strides = [1, 1]} : vector<32x36xbf16> to vector<16x36xbf16>
    %cst_16 = arith.constant dense<0.000000e+00> : vector<16x36xf32>
    %27 = tpu.matmul %0, %26, %cst_16 {dimension_numbers = #tpu.dot_dimension_numbers<[1], [0], [0], [1], [0, 0, 1, 1], [], []>} : vector<16x16xbf16>, vector<16x36xbf16>, vector<16x36xf32> -> vector<16x36xf32>
    %28 = tpu.concatenate %25, %27 in 0 : vector<16x36xf32>, vector<16x36xf32> -> vector<32x36xf32>
    %cst_17 = arith.constant 2.000000e+00 : f32
    %29 = vector.broadcast %cst_17 : f32 to vector<32x36xf32>
    %30 = arith.mulf %29, %28 : vector<32x36xf32>
    %31 = arith.subf %30, %3 : vector<32x36xf32>
    %32 = arith.truncf %31 : vector<32x36xf32> to vector<32x36xbf16>
    %c2 = arith.constant 2 : index
    %c0_18 = arith.constant 0 : index
    %c0_19 = arith.constant 0 : index
    %33 = vector.load %arg4[%c2, %c0_18, %c0_19] : memref<3x36x128xbf16, #tpu.memory_space<vmem>>, vector<1x36x128xbf16>
    %34 = vector.shape_cast %33 : vector<1x36x128xbf16> to vector<36x128xbf16>
    %cst_20 = arith.constant dense<0.000000e+00> : vector<32x128xf32>
    %35 = tpu.matmul %32, %34, %cst_20 {dimension_numbers = #tpu.dot_dimension_numbers<[1], [0], [0], [1], [0, 0, 1, 1], [], []>} : vector<32x36xbf16>, vector<36x128xbf16>, vector<32x128xf32> -> vector<32x128xf32>
    %36 = arith.addf %22, %35 : vector<32x128xf32>
    %37 = vector.extract_strided_slice %36 {offsets = [0, 0], sizes = [32, 64], strides = [1, 1]} : vector<32x128xf32> to vector<32x64xf32>
    %38 = arith.negf %37 : vector<32x64xf32>
    %39 = math.exp %38 : vector<32x64xf32>
    %cst_21 = arith.constant 1.000000e+00 : f32
    %40 = vector.broadcast %cst_21 : f32 to vector<32x64xf32>
    %41 = arith.addf %40, %39 : vector<32x64xf32>
    %42 = arith.divf %40, %41 : vector<32x64xf32>
    %43 = vector.extract_strided_slice %42 {offsets = [0, 0], sizes = [32, 32], strides = [1, 1]} : vector<32x64xf32> to vector<32x32xf32>
    %44 = vector.extract_strided_slice %42 {offsets = [0, 32], sizes = [32, 32], strides = [1, 1]} : vector<32x64xf32> to vector<32x32xf32>
    %45 = arith.mulf %43, %2 : vector<32x32xf32>
    %46 = vector.extract_strided_slice %36 {offsets = [0, 64], sizes = [32, 32], strides = [1, 1]} : vector<32x128xf32> to vector<32x32xf32>
    %47 = arith.truncf %45 : vector<32x32xf32> to vector<32x32xbf16>
    %c0_22 = arith.constant 0 : index
    %c0_23 = arith.constant 0 : index
    %c0_24 = arith.constant 0 : index
    %48 = vector.load %arg5[%c0_22, %c0_23, %c0_24] : memref<3x32x32xbf16, #tpu.memory_space<vmem>>, vector<1x32x32xbf16>
    %49 = vector.shape_cast %48 : vector<1x32x32xbf16> to vector<32x32xbf16>
    %cst_25 = arith.constant dense<0.000000e+00> : vector<32x32xf32>
    %50 = tpu.matmul %47, %49, %cst_25 {dimension_numbers = #tpu.dot_dimension_numbers<[1], [0], [0], [1], [0, 0, 1, 1], [], []>} : vector<32x32xbf16>, vector<32x32xbf16>, vector<32x32xf32> -> vector<32x32xf32>
    %51 = arith.addf %46, %50 : vector<32x32xf32>
    %52 = arith.truncf %45 : vector<32x32xf32> to vector<32x32xbf16>
    %53 = vector.extract_strided_slice %52 {offsets = [0, 0], sizes = [16, 32], strides = [1, 1]} : vector<32x32xbf16> to vector<16x32xbf16>
    %cst_26 = arith.constant dense<0.000000e+00> : vector<16x32xf32>
    %54 = tpu.matmul %0, %53, %cst_26 {dimension_numbers = #tpu.dot_dimension_numbers<[1], [0], [0], [1], [0, 0, 1, 1], [], []>} : vector<16x16xbf16>, vector<16x32xbf16>, vector<16x32xf32> -> vector<16x32xf32>
    %55 = vector.extract_strided_slice %52 {offsets = [16, 0], sizes = [16, 32], strides = [1, 1]} : vector<32x32xbf16> to vector<16x32xbf16>
    %cst_27 = arith.constant dense<0.000000e+00> : vector<16x32xf32>
    %56 = tpu.matmul %0, %55, %cst_27 {dimension_numbers = #tpu.dot_dimension_numbers<[1], [0], [0], [1], [0, 0, 1, 1], [], []>} : vector<16x16xbf16>, vector<16x32xbf16>, vector<16x32xf32> -> vector<16x32xf32>
    %57 = tpu.concatenate %54, %56 in 0 : vector<16x32xf32>, vector<16x32xf32> -> vector<32x32xf32>
    %58 = arith.truncf %57 : vector<32x32xf32> to vector<32x32xbf16>
    %c1_28 = arith.constant 1 : index
    %c0_29 = arith.constant 0 : index
    %c0_30 = arith.constant 0 : index
    %59 = vector.load %arg5[%c1_28, %c0_29, %c0_30] : memref<3x32x32xbf16, #tpu.memory_space<vmem>>, vector<1x32x32xbf16>
    %60 = vector.shape_cast %59 : vector<1x32x32xbf16> to vector<32x32xbf16>
    %cst_31 = arith.constant dense<0.000000e+00> : vector<32x32xf32>
    %61 = tpu.matmul %58, %60, %cst_31 {dimension_numbers = #tpu.dot_dimension_numbers<[1], [0], [0], [1], [0, 0, 1, 1], [], []>} : vector<32x32xbf16>, vector<32x32xbf16>, vector<32x32xf32> -> vector<32x32xf32>
    %62 = arith.addf %51, %61 : vector<32x32xf32>
    %63 = arith.truncf %57 : vector<32x32xf32> to vector<32x32xbf16>
    %64 = vector.extract_strided_slice %63 {offsets = [0, 0], sizes = [16, 32], strides = [1, 1]} : vector<32x32xbf16> to vector<16x32xbf16>
    %cst_32 = arith.constant dense<0.000000e+00> : vector<16x32xf32>
    %65 = tpu.matmul %0, %64, %cst_32 {dimension_numbers = #tpu.dot_dimension_numbers<[1], [0], [0], [1], [0, 0, 1, 1], [], []>} : vector<16x16xbf16>, vector<16x32xbf16>, vector<16x32xf32> -> vector<16x32xf32>
    %66 = vector.extract_strided_slice %63 {offsets = [16, 0], sizes = [16, 32], strides = [1, 1]} : vector<32x32xbf16> to vector<16x32xbf16>
    %cst_33 = arith.constant dense<0.000000e+00> : vector<16x32xf32>
    %67 = tpu.matmul %0, %66, %cst_33 {dimension_numbers = #tpu.dot_dimension_numbers<[1], [0], [0], [1], [0, 0, 1, 1], [], []>} : vector<16x16xbf16>, vector<16x32xbf16>, vector<16x32xf32> -> vector<16x32xf32>
    %68 = tpu.concatenate %65, %67 in 0 : vector<16x32xf32>, vector<16x32xf32> -> vector<32x32xf32>
    %cst_34 = arith.constant 2.000000e+00 : f32
    %69 = vector.broadcast %cst_34 : f32 to vector<32x32xf32>
    %70 = arith.mulf %69, %68 : vector<32x32xf32>
    %71 = arith.subf %70, %45 : vector<32x32xf32>
    %72 = arith.truncf %71 : vector<32x32xf32> to vector<32x32xbf16>
    %c2_35 = arith.constant 2 : index
    %c0_36 = arith.constant 0 : index
    %c0_37 = arith.constant 0 : index
    %73 = vector.load %arg5[%c2_35, %c0_36, %c0_37] : memref<3x32x32xbf16, #tpu.memory_space<vmem>>, vector<1x32x32xbf16>
    %74 = vector.shape_cast %73 : vector<1x32x32xbf16> to vector<32x32xbf16>
    %cst_38 = arith.constant dense<0.000000e+00> : vector<32x32xf32>
    %75 = tpu.matmul %72, %74, %cst_38 {dimension_numbers = #tpu.dot_dimension_numbers<[1], [0], [0], [1], [0, 0, 1, 1], [], []>} : vector<32x32xbf16>, vector<32x32xbf16>, vector<32x32xf32> -> vector<32x32xf32>
    %76 = arith.addf %62, %75 : vector<32x32xf32>
    %77 = math.tanh %76 : vector<32x32xf32>
    %78 = arith.mulf %44, %2 : vector<32x32xf32>
    %cst_39 = arith.constant 1.000000e+00 : f32
    %79 = vector.broadcast %cst_39 : f32 to vector<32x32xf32>
    %80 = arith.subf %79, %44 : vector<32x32xf32>
    %81 = arith.mulf %80, %77 : vector<32x32xf32>
    %82 = arith.addf %78, %81 : vector<32x32xf32>
    %c0_40 = arith.constant 0 : index
    %c0_41 = arith.constant 0 : index
    %83 = vector.load %arg7[%c0_40, %c0_41] : memref<32x32xf32, #tpu.memory_space<vmem>>, vector<32x32xf32>
    tpu.vector_store %arg7[%c0_40, %c0_41], %82 {strides = array<i32>} : memref<32x32xf32, #tpu.memory_space<vmem>>, vector<32x32xf32>,
    return
  }
  func.func @transform_0(%arg0: i32) -> (i32, i32) {
    %c0_i32 = arith.constant 0 : i32
    %c0_i32_0 = arith.constant 0 : i32
    return %arg0, %c0_i32 : i32, i32
  }
  func.func @transform_1(%arg0: i32) -> (i32, i32) {
    %c0_i32 = arith.constant 0 : i32
    %c0_i32_0 = arith.constant 0 : i32
    return %arg0, %c0_i32 : i32, i32
  }
  func.func @transform_2(%arg0: i32) -> (i32, i32) {
    %c0_i32 = arith.constant 0 : i32
    %c0_i32_0 = arith.constant 0 : i32
    %c0_i32_1 = arith.constant 0 : i32
    return %c0_i32, %c0_i32_0 : i32, i32
  }
  func.func @transform_3(%arg0: i32) -> (i32, i32, i32) {
    %c0_i32 = arith.constant 0 : i32
    %c0_i32_0 = arith.constant 0 : i32
    %c0_i32_1 = arith.constant 0 : i32
    %c0_i32_2 = arith.constant 0 : i32
    return %c0_i32, %c0_i32_0, %c0_i32_1 : i32, i32, i32
  }
  func.func @transform_4(%arg0: i32) -> (i32, i32, i32) {
    %c0_i32 = arith.constant 0 : i32
    %c0_i32_0 = arith.constant 0 : i32
    %c0_i32_1 = arith.constant 0 : i32
    %c0_i32_2 = arith.constant 0 : i32
    return %c0_i32, %c0_i32_0, %c0_i32_1 : i32, i32, i32
  }
  func.func @transform_5(%arg0: i32) -> (i32, i32) {
    %c0_i32 = arith.constant 0 : i32
    %c0_i32_0 = arith.constant 0 : i32
    %c0_i32_1 = arith.constant 0 : i32
    return %c0_i32, %c0_i32_0 : i32, i32
  }
  func.func @transform_6(%arg0: i32) -> (i32, i32) {
    %c0_i32 = arith.constant 0 : i32
    %c0_i32_0 = arith.constant 0 : i32
    return %arg0, %c0_i32 : i32, i32
  }
}

</mosaic_0001>

<llo_original>
// kernel: gcrn_cell_pallas.1
$region0: #{gcrn_cell_pallas.1}
  #allocation0 [shape = 'u32[]', space=smem, size = 0x4, offset = 0x4, fixed_abs, tag = 'smem constant byte address 0x4 - core index']
  #allocation1 [shape = 'u32[144,128]{1,0:T(1,128)}', space=vmem, size = 0x12000, scoped, tag = 'internal scratch']
  %s0 = inlined_call_operand.vmem [shape: f32[32,4], index: 0, kind: input, shape index: {}]
  %s1 = inlined_call_operand.vmem [shape: f32[32,32], index: 1, kind: input, shape index: {}]
  %s2 = inlined_call_operand.vmem [shape: bf16[16,16], index: 2, kind: input, shape index: {}]
  %s3 = inlined_call_operand.vmem [shape: bf16[3,36,128], index: 3, kind: input, shape index: {}]
  %s4 = inlined_call_operand.vmem [shape: bf16[3,32,32], index: 4, kind: input, shape index: {}]
  %s5 = inlined_call_operand.vmem [shape: f32[1,128], index: 5, kind: input, shape index: {}]
  %s6 = inlined_call_operand.hbm [shape: f32[32,32], index: 6, kind: output, shape index: {}]
  %s7 = sld [smem:[#allocation0]]
  $region34: #{gcrn_cell_pallas.1} parent=0
    _
  %s9 = ssub.s32 1, %s7
  %s10 = scalar_select 0, %s9, %s7
  $region1: #{gcrn_cell_pallas.1} parent=0
    #allocation2 [shape = 'u8[16384]{0}', space=vmem, size = 0x4000, scoped, tag = 'output window, operand 0, single buffered']
    #allocation3 [shape = 's32[1]{0}', space=sflag, size = 0x4, scoped, tag = 'scoped memory for gcrn_cell_pallas.1']
    %11 = vsyncpa [#allocation3], 0
    // Predicated region
    $region2: #{gcrn_cell_pallas.1} parent=1 // pred_check
      _
    $region3: #{gcrn_cell_pallas.1} parent=1 // pred_check_branch
      %13 = sbr.rel (0) target = $region5
    $region4: #{gcrn_cell_pallas.1} parent=1 // pred_region
      _
    $region5: #{gcrn_cell_pallas.1} parent=1 // pred_fallthru
      _
    // Predicated region
    $region6: #{gcrn_cell_pallas.1} parent=1 // pred_check
      _
    $region7: #{gcrn_cell_pallas.1} parent=1 // pred_check_branch
      %15 = sbr.rel (0) target = $region9
    $region8: #{gcrn_cell_pallas.1} parent=1 // pred_region
      _
    $region9: #{gcrn_cell_pallas.1} parent=1 // pred_fallthru
      _
    // Predicated region
    $region10: #{gcrn_cell_pallas.1} parent=1 // pred_check
      _
    $region11: #{gcrn_cell_pallas.1} parent=1 // pred_check_branch
      %17 = sbr.rel (0) target = $region13
    $region12: #{gcrn_cell_pallas.1} parent=1 // pred_region
      _
    $region13: #{gcrn_cell_pallas.1} parent=1 // pred_fallthru
      _
    // Predicated region
    $region14: #{gcrn_cell_pallas.1} parent=1 // pred_check
      _
    $region15: #{gcrn_cell_pallas.1} parent=1 // pred_check_branch
      %19 = sbr.rel (0) target = $region17
    $region16: #{gcrn_cell_pallas.1} parent=1 // pred_region
      _
    $region17: #{gcrn_cell_pallas.1} parent=1 // pred_fallthru
      _
    // Predicated region
    $region18: #{gcrn_cell_pallas.1} parent=1 // pred_check
      _
    $region19: #{gcrn_cell_pallas.1} parent=1 // pred_check_branch
      %21 = sbr.rel (0) target = $region21
    $region20: #{gcrn_cell_pallas.1} parent=1 // pred_region
      _
    $region21: #{gcrn_cell_pallas.1} parent=1 // pred_fallthru
      _
    // Predicated region
    $region22: #{gcrn_cell_pallas.1} parent=1 // pred_check
      _
    $region23: #{gcrn_cell_pallas.1} parent=1 // pred_check_branch
      %23 = sbr.rel (0) target = $region25
    $region24: #{gcrn_cell_pallas.1} parent=1 // pred_region
      _
    $region25: #{gcrn_cell_pallas.1} parent=1 // pred_fallthru
      _
    %v25 = vld [vmem:[%s2] sm:$0xf]
    %v26 = vld [vmem:[%s2 + $0x4] sm:$0xf]
    %v27 = vld [vmem:[%s0] sm:$0xff]
    %v28 = vld [vmem:[%s0 + $0x8] sm:$0xff]
    %v29 = vld [vmem:[%s0 + $0x10] sm:$0xff]
    %v30 = vld [vmem:[%s0 + $0x18] sm:$0xff]
    %v31 = vld [vmem:[%s1] sm:$0xff]
    %v32 = vld [vmem:[%s1 + $0x8] sm:$0xff]
    %v33 = vld [vmem:[%s1 + $0x10] sm:$0xff]
    %v34 = vld [vmem:[%s1 + $0x18] sm:$0xff]
    %39 = vrot.lane.b32.xlu0 %v31, 4
    %v40 = vpop.permute.xlu0 %39
    %41 = vrot.lane.b32.xlu0 %v32, 4
    %v42 = vpop.permute.xlu0 %41
    %43 = vrot.lane.b32.xlu0 %v33, 4
    %v44 = vpop.permute.xlu0 %43
    %45 = vrot.lane.b32.xlu0 %v34, 4
    %v46 = vpop.permute.xlu0 %45
    %vm51 = vcmask 31744
    %v52 = vsel %vm51, %v27, %v40
    %v53 = vsel %vm51, %v28, %v42
    %v54 = vsel %vm51, %v29, %v44
    %v55 = vsel %vm51, %v30, %v46
    %v56 = vld [vmem:[%s5] sm:$0x1]
    %v58 = vlaneseq
    %v59 = vshrl.u32 %v58, 7
    %v60 = vsub.s32 0, %v59
    %v61 = vrot.slane %v56, %v60
    %v63 = vpack.c.bf16 %v53, %v52
    %v64 = vpack.c.bf16 %v55, %v54
    %v65 = vld [vmem:[%s3] sm:$0xf]
    %v66 = vld [vmem:[%s3 + $0x4] sm:$0xf]
    %v67 = vld [vmem:[%s3 + $0x8] sm:$0xf]
    %v68 = vld [vmem:[%s3 + $0xc] sm:$0xf]
    %v69 = vld [vmem:[%s3 + $0x10] sm:$0x3]
    %v75 = vunpack.c.l.b16 %v65
    %v76 = vunpack.c.l.b16 %v66
    %v77 = vunpack.c.l.b16 %v67
    %v78 = vunpack.c.l.b16 %v68
    %v79 = vunpack.c.l.b16 %v69
    %v80 = vpack.c.b16 %v76, %v75
    %v81 = vpack.c.b16 %v78, %v77
    %v82 = vpack.c.b16 %v79, %v79
    %vm85 = vcmask 293888
    %v87 = vsel %vm85, %v63, 0
    %v90 = vsel %vm85, %v64, 0
    %vm92 = vcmask 1041408
    %v94 = vsel %vm92, %v82, 0
    %96 = vmatprep.subr.bf16.mxu0 0
    %97 = vmatpush1.bf16.msra.mxu0 %v80
    %98 = vmatprep.subr.bf16.mxu0 0
    %99 = vmatpush1.bf16.msra.mxu0 %v81
    %100 = vmatprep.subr.bf16.mxu0 0
    %101 = vmatpush1.bf16.msra.mxu0 %v94
    %102 = vmatprep.subr.bf16.mxu0 0
    %103 = vmatpush1.bf16.msra.mxu0 0
    %104 = vmatprep.subr.bf16.mxu0 0
    %105 = vmatpush1.bf16.msra.mxu0 0
    %106 = vmatprep.subr.bf16.mxu0 0
    %107 = vmatpush1.bf16.msra.mxu0 0
    %108 = vmatprep.subr.bf16.mxu0 0
    %109 = vmatpush1.bf16.msra.mxu0 0
    %110 = vmatprep.subr.bf16.mxu0 0
    %111 = vmatpush1.bf16.msra.mxu0 0
    %112 = vmatprep.subr.bf16.mxu0 0
    %113 = vmatpush1.bf16.msra.mxu0 0
    %114 = vmatprep.subr.bf16.mxu0 0
    %115 = vmatpush1.bf16.msra.mxu0 0
    %116 = vmatprep.subr.bf16.mxu0 0
    %117 = vmatpush1.bf16.msra.mxu0 0
    %118 = vmatprep.subr.bf16.mxu0 0
    %119 = vmatpush1.bf16.msra.mxu0 0
    %120 = vmatprep.subr.bf16.mxu0 0
    %121 = vmatpush1.bf16.msra.mxu0 0
    %122 = vmatprep.subr.bf16.mxu0 0
    %123 = vmatpush1.bf16.msra.mxu0 0
    %124 = vmatprep.subr.bf16.mxu0 0
    %125 = vmatpush1.bf16.msra.mxu0 0
    %126 = vmatprep.subr.bf16.mxu0 0
    %127 = vmatpush1.bf16.msra.mxu0 0
    %128 = vmatprep.mubr.bf16.mxu0 0
    %129 = vmatmul.mubr.bf16.gmra.mrb[0].mxu0 %v87
    %v130 = vpop.f32.mrb[0].mxu0
    %v131 = vadd.f32 0.0, %v130
    %v132 = vpop.f32.mrb[0].mxu0
    %v133 = vpop.f32.mrb[0].mxu0
    %v134 = vadd.f32 0.0, %v133
    %v135 = vpop.f32.mrb[0].mxu0
    %136 = vmatprep.mubr.bf16.mxu0 0
    %137 = vmatmul.mubr.bf16.gmra.mrb[0].mxu0 %v90
    %v138 = vpop.f32.mrb[0].mxu0
    %v139 = vadd.f32 0.0, %v138
    %v140 = vpop.f32.mrb[0].mxu0
    %v141 = vpop.f32.mrb[0].mxu0
    %v142 = vadd.f32 0.0, %v141
    %v143 = vpop.f32.mrb[0].mxu0
    %144 = vdwg.mxu0
    %v145 = vadd.f32 %v61, %v131
    %v146 = vadd.f32 %v61, %v134
    %v147 = vadd.f32 %v61, %v139
    %v148 = vadd.f32 %v61, %v142
    %v151 = vunpack.c.l.b16 %v25
    %v152 = vunpack.c.l.b16 %v26
    %v153 = vpack.c.b16 %v152, %v151
    %vm154 = vcmask 130048
    %v156 = vsel %vm154, %v153, 0
    %158 = vmatprep.subr.bf16.mxu0 0
    %159 = vmatpush1.bf16.msra.mxu0 %v63
    %160 = vmatprep.subr.bf16.mxu0 0
    %161 = vmatpush1.bf16.msra.mxu0 0
    %162 = vmatprep.subr.bf16.mxu0 0
    %163 = vmatpush1.bf16.msra.mxu0 0
    %164 = vmatprep.subr.bf16.mxu0 0
    %165 = vmatpush1.bf16.msra.mxu0 0
    %166 = vmatprep.subr.bf16.mxu0 0
    %167 = vmatpush1.bf16.msra.mxu0 0
    %168 = vmatprep.subr.bf16.mxu0 0
    %169 = vmatpush1.bf16.msra.mxu0 0
    %170 = vmatprep.subr.bf16.mxu0 0
    %171 = vmatpush1.bf16.msra.mxu0 0
    %172 = vmatprep.subr.bf16.mxu0 0
    %173 = vmatpush1.bf16.msra.mxu0 0
    %174 = vmatprep.subr.bf16.mxu0 0
    %175 = vmatpush1.bf16.msra.mxu0 0
    %176 = vmatprep.subr.bf16.mxu0 0
    %177 = vmatpush1.bf16.msra.mxu0 0
    %178 = vmatprep.subr.bf16.mxu0 0
    %179 = vmatpush1.bf16.msra.mxu0 0
    %180 = vmatprep.subr.bf16.mxu0 0
    %181 = vmatpush1.bf16.msra.mxu0 0
    %182 = vmatprep.subr.bf16.mxu0 0
    %183 = vmatpush1.bf16.msra.mxu0 0
    %184 = vmatprep.subr.bf16.mxu0 0
    %185 = vmatpush1.bf16.msra.mxu0 0
    %186 = vmatprep.subr.bf16.mxu0 0
    %187 = vmatpush1.bf16.msra.mxu0 0
    %188 = vmatprep.subr.bf16.mxu0 0
    %189 = vmatpush1.bf16.msra.mxu0 0
    %190 = vmatprep.mubr.bf16.mxu0 0
    %191 = vmatmul.mubr.bf16.gmra.mrb[0].mxu0 %v156
    %v192 = vpop.f32.mrb[0].mxu0
    %v193 = vadd.f32 0.0, %v192
    %v194 = vpop.f32.mrb[0].mxu0
    %v195 = vpop.f32.mrb[0].mxu0
    %v196 = vadd.f32 0.0, %v195
    %v197 = vpop.f32.mrb[0].mxu0
    %198 = vdwg.mxu0
    %199 = vmatprep.subr.bf16.mxu0 0
    %200 = vmatpush1.bf16.msra.mxu0 %v64
    %201 = vmatprep.subr.bf16.mxu0 0
    %202 = vmatpush1.bf16.msra.mxu0 0
    %203 = vmatprep.subr.bf16.mxu0 0
    %204 = vmatpush1.bf16.msra.mxu0 0
    %205 = vmatprep.subr.bf16.mxu0 0
    %206 = vmatpush1.bf16.msra.mxu0 0
    %207 = vmatprep.subr.bf16.mxu0 0
    %208 = vmatpush1.bf16.msra.mxu0 0
    %209 = vmatprep.subr.bf16.mxu0 0
    %210 = vmatpush1.bf16.msra.mxu0 0
    %211 = vmatprep.subr.bf16.mxu0 0
    %212 = vmatpush1.bf16.msra.mxu0 0
    %213 = vmatprep.subr.bf16.mxu0 0
    %214 = vmatpush1.bf16.msra.mxu0 0
    %215 = vmatprep.subr.bf16.mxu0 0
    %216 = vmatpush1.bf16.msra.mxu0 0
    %217 = vmatprep.subr.bf16.mxu0 0
    %218 = vmatpush1.bf16.msra.mxu0 0
    %219 = vmatprep.subr.bf16.mxu0 0
    %220 = vmatpush1.bf16.msra.mxu0 0
    %221 = vmatprep.subr.bf16.mxu0 0
    %222 = vmatpush1.bf16.msra.mxu0 0
    %223 = vmatprep.subr.bf16.mxu0 0
    %224 = vmatpush1.bf16.msra.mxu0 0
    %225 = vmatprep.subr.bf16.mxu0 0
    %226 = vmatpush1.bf16.msra.mxu0 0
    %227 = vmatprep.subr.bf16.mxu0 0
    %228 = vmatpush1.bf16.msra.mxu0 0
    %229 = vmatprep.subr.bf16.mxu0 0
    %230 = vmatpush1.bf16.msra.mxu0 0
    %231 = vmatprep.mubr.bf16.mxu0 0
    %232 = vmatmul.mubr.bf16.gmra.mrb[0].mxu0 %v156
    %v233 = vpop.f32.mrb[0].mxu0
    %v234 = vadd.f32 0.0, %v233
    %v235 = vpop.f32.mrb[0].mxu0
    %v236 = vpop.f32.mrb[0].mxu0
    %v237 = vadd.f32 0.0, %v236
    %v238 = vpop.f32.mrb[0].mxu0
    %239 = vdwg.mxu0
    %v240 = vpack.c.bf16 %v196, %v193
    %v241 = vpack.c.bf16 %v237, %v234
    %s242 = scalar_lea.vmem %s3, 20
    %v243 = vld [vmem:[%s242] sm:$0xf]
    %v244 = vld [vmem:[%s242 + $0x4] sm:$0xf]
    %v245 = vld [vmem:[%s242 + $0x8] sm:$0xf]
    %v246 = vld [vmem:[%s242 + $0xc] sm:$0xf]
    %v247 = vld [vmem:[%s242 + $0x10] sm:$0x3]
    %v253 = vunpack.c.l.b16 %v243
    %v254 = vunpack.c.l.b16 %v244
    %v255 = vunpack.c.l.b16 %v245
    %v256 = vunpack.c.l.b16 %v246
    %v257 = vunpack.c.l.b16 %v247
    %v258 = vpack.c.b16 %v254, %v253
    %v259 = vpack.c.b16 %v256, %v255
    %v260 = vpack.c.b16 %v257, %v257
    %v264 = vsel %vm85, %v240, 0
    %v267 = vsel %vm85, %v241, 0
    %v270 = vsel %vm92, %v260, 0
    %272 = vmatprep.subr.bf16.mxu0 0
    %273 = vmatpush1.bf16.msra.mxu0 %v258
    %274 = vmatprep.subr.bf16.mxu0 0
    %275 = vmatpush1.bf16.msra.mxu0 %v259
    %276 = vmatprep.subr.bf16.mxu0 0
    %277 = vmatpush1.bf16.msra.mxu0 %v270
    %278 = vmatprep.subr.bf16.mxu0 0
    %279 = vmatpush1.bf16.msra.mxu0 0
    %280 = vmatprep.subr.bf16.mxu0 0
    %281 = vmatpush1.bf16.msra.mxu0 0
    %282 = vmatprep.subr.bf16.mxu0 0
    %283 = vmatpush1.bf16.msra.mxu0 0
    %284 = vmatprep.subr.bf16.mxu0 0
    %285 = vmatpush1.bf16.msra.mxu0 0
    %286 = vmatprep.subr.bf16.mxu0 0
    %287 = vmatpush1.bf16.msra.mxu0 0
    %288 = vmatprep.subr.bf16.mxu0 0
    %289 = vmatpush1.bf16.msra.mxu0 0
    %290 = vmatprep.subr.bf16.mxu0 0
    %291 = vmatpush1.bf16.msra.mxu0 0
    %292 = vmatprep.subr.bf16.mxu0 0
    %293 = vmatpush1.bf16.msra.mxu0 0
    %294 = vmatprep.subr.bf16.mxu0 0
    %295 = vmatpush1.bf16.msra.mxu0 0
    %296 = vmatprep.subr.bf16.mxu0 0
    %297 = vmatpush1.bf16.msra.mxu0 0
    %298 = vmatprep.subr.bf16.mxu0 0
    %299 = vmatpush1.bf16.msra.mxu0 0
    %300 = vmatprep.subr.bf16.mxu0 0
    %301 = vmatpush1.bf16.msra.mxu0 0
    %302 = vmatprep.subr.bf16.mxu0 0
    %303 = vmatpush1.bf16.msra.mxu0 0
    %304 = vmatprep.mubr.bf16.mxu0 0
    %305 = vmatmul.mubr.bf16.gmra.mrb[0].mxu0 %v264
    %v306 = vpop.f32.mrb[0].mxu0
    %v307 = vadd.f32 0.0, %v306
    %v308 = vpop.f32.mrb[0].mxu0
    %v309 = vpop.f32.mrb[0].mxu0
    %v310 = vadd.f32 0.0, %v309
    %v311 = vpop.f32.mrb[0].mxu0
    %312 = vmatprep.mubr.bf16.mxu0 0
    %313 = vmatmul.mubr.bf16.gmra.mrb[0].mxu0 %v267
    %v314 = vpop.f32.mrb[0].mxu0
    %v315 = vadd.f32 0.0, %v314
    %v316 = vpop.f32.mrb[0].mxu0
    %v317 = vpop.f32.mrb[0].mxu0
    %v318 = vadd.f32 0.0, %v317
    %v319 = vpop.f32.mrb[0].mxu0
    %320 = vdwg.mxu0
    %v321 = vadd.f32 %v145, %v307
    %v322 = vadd.f32 %v146, %v310
    %v323 = vadd.f32 %v147, %v315
    %v324 = vadd.f32 %v148, %v318
    %325 = vmatprep.subr.bf16.mxu0 0
    %326 = vmatpush1.bf16.msra.mxu0 %v240
    %327 = vmatprep.subr.bf16.mxu0 0
    %328 = vmatpush1.bf16.msra.mxu0 0
    %329 = vmatprep.subr.bf16.mxu0 0
    %330 = vmatpush1.bf16.msra.mxu0 0
    %331 = vmatprep.subr.bf16.mxu0 0
    %332 = vmatpush1.bf16.msra.mxu0 0
    %333 = vmatprep.subr.bf16.mxu0 0
    %334 = vmatpush1.bf16.msra.mxu0 0
    %335 = vmatprep.subr.bf16.mxu0 0
    %336 = vmatpush1.bf16.msra.mxu0 0
    %337 = vmatprep.subr.bf16.mxu0 0
    %338 = vmatpush1.bf16.msra.mxu0 0
    %339 = vmatprep.subr.bf16.mxu0 0
    %340 = vmatpush1.bf16.msra.mxu0 0
    %341 = vmatprep.subr.bf16.mxu0 0
    %342 = vmatpush1.bf16.msra.mxu0 0
    %343 = vmatprep.subr.bf16.mxu0 0
    %344 = vmatpush1.bf16.msra.mxu0 0
    %345 = vmatprep.subr.bf16.mxu0 0
    %346 = vmatpush1.bf16.msra.mxu0 0
    %347 = vmatprep.subr.bf16.mxu0 0
    %348 = vmatpush1.bf16.msra.mxu0 0
    %349 = vmatprep.subr.bf16.mxu0 0
    %350 = vmatpush1.bf16.msra.mxu0 0
    %351 = vmatprep.subr.bf16.mxu0 0
    %352 = vmatpush1.bf16.msra.mxu0 0
    %353 = vmatprep.subr.bf16.mxu0 0
    %354 = vmatpush1.bf16.msra.mxu0 0
    %355 = vmatprep.subr.bf16.mxu0 0
    %356 = vmatpush1.bf16.msra.mxu0 0
    %357 = vmatprep.mubr.bf16.mxu0 0
    %358 = vmatmul.mubr.bf16.gmra.mrb[0].mxu0 %v156
    %v359 = vpop.f32.mrb[0].mxu0
    %v360 = vadd.f32 0.0, %v359
    %v361 = vpop.f32.mrb[0].mxu0
    %v362 = vpop.f32.mrb[0].mxu0
    %v363 = vadd.f32 0.0, %v362
    %v364 = vpop.f32.mrb[0].mxu0
    %365 = vdwg.mxu0
    %366 = vmatprep.subr.bf16.mxu0 0
    %367 = vmatpush1.bf16.msra.mxu0 %v241
    %368 = vmatprep.subr.bf16.mxu0 0
    %369 = vmatpush1.bf16.msra.mxu0 0
    %370 = vmatprep.subr.bf16.mxu0 0
    %371 = vmatpush1.bf16.msra.mxu0 0
    %372 = vmatprep.subr.bf16.mxu0 0
    %373 = vmatpush1.bf16.msra.mxu0 0
    %374 = vmatprep.subr.bf16.mxu0 0
    %375 = vmatpush1.bf16.msra.mxu0 0
    %376 = vmatprep.subr.bf16.mxu0 0
    %377 = vmatpush1.bf16.msra.mxu0 0
    %378 = vmatprep.subr.bf16.mxu0 0
    %379 = vmatpush1.bf16.msra.mxu0 0
    %380 = vmatprep.subr.bf16.mxu0 0
    %381 = vmatpush1.bf16.msra.mxu0 0
    %382 = vmatprep.subr.bf16.mxu0 0
    %383 = vmatpush1.bf16.msra.mxu0 0
    %384 = vmatprep.subr.bf16.mxu0 0
    %385 = vmatpush1.bf16.msra.mxu0 0
    %386 = vmatprep.subr.bf16.mxu0 0
    %387 = vmatpush1.bf16.msra.mxu0 0
    %388 = vmatprep.subr.bf16.mxu0 0
    %389 = vmatpush1.bf16.msra.mxu0 0
    %390 = vmatprep.subr.bf16.mxu0 0
    %391 = vmatpush1.bf16.msra.mxu0 0
    %392 = vmatprep.subr.bf16.mxu0 0
    %393 = vmatpush1.bf16.msra.mxu0 0
    %394 = vmatprep.subr.bf16.mxu0 0
    %395 = vmatpush1.bf16.msra.mxu0 0
    %396 = vmatprep.subr.bf16.mxu0 0
    %397 = vmatpush1.bf16.msra.mxu0 0
    %398 = vmatprep.mubr.bf16.mxu0 0
    %399 = vmatmul.mubr.bf16.gmra.mrb[0].mxu0 %v156
    %v400 = vpop.f32.mrb[0].mxu0
    %v401 = vadd.f32 0.0, %v400
    %v402 = vpop.f32.mrb[0].mxu0
    %v403 = vpop.f32.mrb[0].mxu0
    %v404 = vadd.f32 0.0, %v403
    %v405 = vpop.f32.mrb[0].mxu0
    %406 = vdwg.mxu0
    %v407 = vmul.f32 %v360, 2.0
    %v408 = vmul.f32 %v363, 2.0
    %v409 = vmul.f32 %v401, 2.0
    %v410 = vmul.f32 %v404, 2.0
    %v411 = vsub.f32 %v407, %v52
    %v412 = vsub.f32 %v408, %v53
    %v413 = vsub.f32 %v409, %v54
    %v414 = vsub.f32 %v410, %v55
    %v415 = vpack.c.bf16 %v412, %v411
    %v416 = vpack.c.bf16 %v414, %v413
    %s417 = scalar_lea.vmem %s3, 40
    %v418 = vld [vmem:[%s417] sm:$0xf]
    %v419 = vld [vmem:[%s417 + $0x4] sm:$0xf]
    %v420 = vld [vmem:[%s417 + $0x8] sm:$0xf]
    %v421 = vld [vmem:[%s417 + $0xc] sm:$0xf]
    %v422 = vld [vmem:[%s417 + $0x10] sm:$0x3]
    %v428 = vunpack.c.l.b16 %v418
    %v429 = vunpack.c.l.b16 %v419
    %v430 = vunpack.c.l.b16 %v420
    %v431 = vunpack.c.l.b16 %v421
    %v432 = vunpack.c.l.b16 %v422
    %v433 = vpack.c.b16 %v429, %v428
    %v434 = vpack.c.b16 %v431, %v430
    %v435 = vpack.c.b16 %v432, %v432
    %v439 = vsel %vm85, %v415, 0
    %v442 = vsel %vm85, %v416, 0
    %v445 = vsel %vm92, %v435, 0
    %447 = vmatprep.subr.bf16.mxu0 0
    %448 = vmatpush1.bf16.msra.mxu0 %v433
    %449 = vmatprep.subr.bf16.mxu0 0
    %450 = vmatpush1.bf16.msra.mxu0 %v434
    %451 = vmatprep.subr.bf16.mxu0 0
    %452 = vmatpush1.bf16.msra.mxu0 %v445
    %453 = vmatprep.subr.bf16.mxu0 0
    %454 = vmatpush1.bf16.msra.mxu0 0
    %455 = vmatprep.subr.bf16.mxu0 0
    %456 = vmatpush1.bf16.msra.mxu0 0
    %457 = vmatprep.subr.bf16.mxu0 0
    %458 = vmatpush1.bf16.msra.mxu0 0
    %459 = vmatprep.subr.bf16.mxu0 0
    %460 = vmatpush1.bf16.msra.mxu0 0
    %461 = vmatprep.subr.bf16.mxu0 0
    %462 = vmatpush1.bf16.msra.mxu0 0
    %463 = vmatprep.subr.bf16.mxu0 0
    %464 = vmatpush1.bf16.msra.mxu0 0
    %465 = vmatprep.subr.bf16.mxu0 0
    %466 = vmatpush1.bf16.msra.mxu0 0
    %467 = vmatprep.subr.bf16.mxu0 0
    %468 = vmatpush1.bf16.msra.mxu0 0
    %469 = vmatprep.subr.bf16.mxu0 0
    %470 = vmatpush1.bf16.msra.mxu0 0
    %471 = vmatprep.subr.bf16.mxu0 0
    %472 = vmatpush1.bf16.msra.mxu0 0
    %473 = vmatprep.subr.bf16.mxu0 0
    %474 = vmatpush1.bf16.msra.mxu0 0
    %475 = vmatprep.subr.bf16.mxu0 0
    %476 = vmatpush1.bf16.msra.mxu0 0
    %477 = vmatprep.subr.bf16.mxu0 0
    %478 = vmatpush1.bf16.msra.mxu0 0
    %479 = vmatprep.mubr.bf16.mxu0 0
    %480 = vmatmul.mubr.bf16.gmra.mrb[0].mxu0 %v439
    %v481 = vpop.f32.mrb[0].mxu0
    %v482 = vadd.f32 0.0, %v481
    %v483 = vpop.f32.mrb[0].mxu0
    %v484 = vpop.f32.mrb[0].mxu0
    %v485 = vadd.f32 0.0, %v484
    %v486 = vpop.f32.mrb[0].mxu0
    %487 = vmatprep.mubr.bf16.mxu0 0
    %488 = vmatmul.mubr.bf16.gmra.mrb[0].mxu0 %v442
    %v489 = vpop.f32.mrb[0].mxu0
    %v490 = vadd.f32 0.0, %v489
    %v491 = vpop.f32.mrb[0].mxu0
    %v492 = vpop.f32.mrb[0].mxu0
    %v493 = vadd.f32 0.0, %v492
    %v494 = vpop.f32.mrb[0].mxu0
    %495 = vdwg.mxu0
    %v496 = vadd.f32 %v321, %v482
    %v497 = vadd.f32 %v322, %v485
    %v498 = vadd.f32 %v323, %v490
    %v499 = vadd.f32 %v324, %v493
    %v500 = vxor.u32 %v496, 2147483648
    %v501 = vxor.u32 %v497, 2147483648
    %v502 = vxor.u32 %v498, 2147483648
    %v503 = vxor.u32 %v499, 2147483648
    %v504 = vmul.f32 %v500, 1.442695
    %v505 = vpow.pop %v504
    %v506 = vmul.f32 %v501, 1.442695
    %v507 = vpow.pop %v506
    %v508 = vmul.f32 %v502, 1.442695
    %v509 = vpow.pop %v508
    %v510 = vmul.f32 %v503, 1.442695
    %v511 = vpow.pop %v510
    %v512 = vadd.f32 %v505, 1.0
    %v513 = vadd.f32 %v507, 1.0
    %v514 = vadd.f32 %v509, 1.0
    %v515 = vadd.f32 %v511, 1.0
    %v516 = vrcp.pop %v512
    %v517 = vmul.f32 1.0, %v516
    %v518 = vrcp.pop %v513
    %v519 = vmul.f32 1.0, %v518
    %v520 = vrcp.pop %v514
    %v521 = vmul.f32 1.0, %v520
    %v522 = vrcp.pop %v515
    %v523 = vmul.f32 1.0, %v522
    %v524 = vmul.f32 %v517, %v31
    %v525 = vmul.f32 %v519, %v32
    %v526 = vmul.f32 %v521, %v33
    %v527 = vmul.f32 %v523, %v34
    %v528 = vpack.c.bf16 %v525, %v524
    %v529 = vpack.c.bf16 %v527, %v526
    %v530 = vld [vmem:[%s4] sm:$0xf]
    %v531 = vld [vmem:[%s4 + $0x4] sm:$0xf]
    %v532 = vld [vmem:[%s4 + $0x8] sm:$0xf]
    %v533 = vld [vmem:[%s4 + $0xc] sm:$0xf]
    %v538 = vunpack.c.l.b16 %v530
    %v539 = vunpack.c.l.b16 %v531
    %v540 = vunpack.c.l.b16 %v532
    %v541 = vunpack.c.l.b16 %v533
    %v542 = vpack.c.b16 %v539, %v538
    %v543 = vpack.c.b16 %v541, %v540
    %vm546 = vcmask 261120
    %v548 = vsel %vm546, %v528, 0
    %v551 = vsel %vm546, %v529, 0
    %553 = vmatprep.subr.bf16.mxu0 0
    %554 = vmatpush1.bf16.msra.mxu0 %v542
    %555 = vmatprep.subr.bf16.mxu0 0
    %556 = vmatpush1.bf16.msra.mxu0 %v543
    %557 = vmatprep.subr.bf16.mxu0 0
    %558 = vmatpush1.bf16.msra.mxu0 0
    %559 = vmatprep.subr.bf16.mxu0 0
    %560 = vmatpush1.bf16.msra.mxu0 0
    %561 = vmatprep.subr.bf16.mxu0 0
    %562 = vmatpush1.bf16.msra.mxu0 0
    %563 = vmatprep.subr.bf16.mxu0 0
    %564 = vmatpush1.bf16.msra.mxu0 0
    %565 = vmatprep.subr.bf16.mxu0 0
    %566 = vmatpush1.bf16.msra.mxu0 0
    %567 = vmatprep.subr.bf16.mxu0 0
    %568 = vmatpush1.bf16.msra.mxu0 0
    %569 = vmatprep.subr.bf16.mxu0 0
    %570 = vmatpush1.bf16.msra.mxu0 0
    %571 = vmatprep.subr.bf16.mxu0 0
    %572 = vmatpush1.bf16.msra.mxu0 0
    %573 = vmatprep.subr.bf16.mxu0 0
    %574 = vmatpush1.bf16.msra.mxu0 0
    %575 = vmatprep.subr.bf16.mxu0 0
    %576 = vmatpush1.bf16.msra.mxu0 0
    %577 = vmatprep.subr.bf16.mxu0 0
    %578 = vmatpush1.bf16.msra.mxu0 0
    %579 = vmatprep.subr.bf16.mxu0 0
    %580 = vmatpush1.bf16.msra.mxu0 0
    %581 = vmatprep.subr.bf16.mxu0 0
    %582 = vmatpush1.bf16.msra.mxu0 0
    %583 = vmatprep.subr.bf16.mxu0 0
    %584 = vmatpush1.bf16.msra.mxu0 0
    %585 = vmatprep.mubr.bf16.mxu0 0
    %586 = vmatmul.mubr.bf16.gmra.mrb[0].mxu0 %v548
    %v587 = vpop.f32.mrb[0].mxu0
    %v588 = vadd.f32 0.0, %v587
    %v589 = vpop.f32.mrb[0].mxu0
    %v590 = vpop.f32.mrb[0].mxu0
    %v591 = vadd.f32 0.0, %v590
    %v592 = vpop.f32.mrb[0].mxu0
    %593 = vmatprep.mubr.bf16.mxu0 0
    %594 = vmatmul.mubr.bf16.gmra.mrb[0].mxu0 %v551
    %v595 = vpop.f32.mrb[0].mxu0
    %v596 = vadd.f32 0.0, %v595
    %v597 = vpop.f32.mrb[0].mxu0
    %v598 = vpop.f32.mrb[0].mxu0
    %v599 = vadd.f32 0.0, %v598
    %v600 = vpop.f32.mrb[0].mxu0
    %601 = vdwg.mxu0
    %606 = vrot.lane.b32.xlu0 %v588, 64
    %v607 = vpop.permute.xlu0 %606
    %608 = vrot.lane.b32.xlu0 %v591, 64
    %v609 = vpop.permute.xlu0 %608
    %610 = vrot.lane.b32.xlu0 %v596, 64
    %v611 = vpop.permute.xlu0 %610
    %612 = vrot.lane.b32.xlu0 %v599, 64
    %v613 = vpop.permute.xlu0 %612
    %v618 = vadd.f32 %v496, %v607
    %v619 = vadd.f32 %v497, %v609
    %v620 = vadd.f32 %v498, %v611
    %v621 = vadd.f32 %v499, %v613
    %622 = vmatprep.subr.bf16.mxu0 0
    %623 = vmatpush1.bf16.msra.mxu0 %v528
    %624 = vmatprep.subr.bf16.mxu0 0
    %625 = vmatpush1.bf16.msra.mxu0 0
    %626 = vmatprep.subr.bf16.mxu0 0
    %627 = vmatpush1.bf16.msra.mxu0 0
    %628 = vmatprep.subr.bf16.mxu0 0
    %629 = vmatpush1.bf16.msra.mxu0 0
    %630 = vmatprep.subr.bf16.mxu0 0
    %631 = vmatpush1.bf16.msra.mxu0 0
    %632 = vmatprep.subr.bf16.mxu0 0
    %633 = vmatpush1.bf16.msra.mxu0 0
    %634 = vmatprep.subr.bf16.mxu0 0
    %635 = vmatpush1.bf16.msra.mxu0 0
    %636 = vmatprep.subr.bf16.mxu0 0
    %637 = vmatpush1.bf16.msra.mxu0 0
    %638 = vmatprep.subr.bf16.mxu0 0
    %639 = vmatpush1.bf16.msra.mxu0 0
    %640 = vmatprep.subr.bf16.mxu0 0
    %641 = vmatpush1.bf16.msra.mxu0 0
    %642 = vmatprep.subr.bf16.mxu0 0
    %643 = vmatpush1.bf16.msra.mxu0 0
    %644 = vmatprep.subr.bf16.mxu0 0
    %645 = vmatpush1.bf16.msra.mxu0 0
    %646 = vmatprep.subr.bf16.mxu0 0
    %647 = vmatpush1.bf16.msra.mxu0 0
    %648 = vmatprep.subr.bf16.mxu0 0
    %649 = vmatpush1.bf16.msra.mxu0 0
    %650 = vmatprep.subr.bf16.mxu0 0
    %651 = vmatpush1.bf16.msra.mxu0 0
    %652 = vmatprep.subr.bf16.mxu0 0
    %653 = vmatpush1.bf16.msra.mxu0 0
    %654 = vmatprep.mubr.bf16.mxu0 0
    %655 = vmatmul.mubr.bf16.gmra.mrb[0].mxu0 %v156
    %v656 = vpop.f32.mrb[0].mxu0
    %v657 = vadd.f32 0.0, %v656
    %v658 = vpop.f32.mrb[0].mxu0
    %v659 = vpop.f32.mrb[0].mxu0
    %v660 = vadd.f32 0.0, %v659
    %v661 = vpop.f32.mrb[0].mxu0
    %662 = vdwg.mxu0
    %663 = vmatprep.subr.bf16.mxu0 0
    %664 = vmatpush1.bf16.msra.mxu0 %v529
    %665 = vmatprep.subr.bf16.mxu0 0
    %666 = vmatpush1.bf16.msra.mxu0 0
    %667 = vmatprep.subr.bf16.mxu0 0
    %668 = vmatpush1.bf16.msra.mxu0 0
    %669 = vmatprep.subr.bf16.mxu0 0
    %670 = vmatpush1.bf16.msra.mxu0 0
    %671 = vmatprep.subr.bf16.mxu0 0
    %672 = vmatpush1.bf16.msra.mxu0 0
    %673 = vmatprep.subr.bf16.mxu0 0
    %674 = vmatpush1.bf16.msra.mxu0 0
    %675 = vmatprep.subr.bf16.mxu0 0
    %676 = vmatpush1.bf16.msra.mxu0 0
    %677 = vmatprep.subr.bf16.mxu0 0
    %678 = vmatpush1.bf16.msra.mxu0 0
    %679 = vmatprep.subr.bf16.mxu0 0
    %680 = vmatpush1.bf16.msra.mxu0 0
    %681 = vmatprep.subr.bf16.mxu0 0
    %682 = vmatpush1.bf16.msra.mxu0 0
    %683 = vmatprep.subr.bf16.mxu0 0
    %684 = vmatpush1.bf16.msra.mxu0 0
    %685 = vmatprep.subr.bf16.mxu0 0
    %686 = vmatpush1.bf16.msra.mxu0 0
    %687 = vmatprep.subr.bf16.mxu0 0
    %688 = vmatpush1.bf16.msra.mxu0 0
    %689 = vmatprep.subr.bf16.mxu0 0
    %690 = vmatpush1.bf16.msra.mxu0 0
    %691 = vmatprep.subr.bf16.mxu0 0
    %692 = vmatpush1.bf16.msra.mxu0 0
    %693 = vmatprep.subr.bf16.mxu0 0
    %694 = vmatpush1.bf16.msra.mxu0 0
    %695 = vmatprep.mubr.bf16.mxu0 0
    %696 = vmatmul.mubr.bf16.gmra.mrb[0].mxu0 %v156
    %v697 = vpop.f32.mrb[0].mxu0
    %v698 = vadd.f32 0.0, %v697
    %v699 = vpop.f32.mrb[0].mxu0
    %v700 = vpop.f32.mrb[0].mxu0
    %v701 = vadd.f32 0.0, %v700
    %v702 = vpop.f32.mrb[0].mxu0
    %703 = vdwg.mxu0
    %v704 = vpack.c.bf16 %v660, %v657
    %v705 = vpack.c.bf16 %v701, %v698
    %s706 = scalar_lea.vmem %s4, 16
    %v707 = vld [vmem:[%s706] sm:$0xf]
    %v708 = vld [vmem:[%s706 + $0x4] sm:$0xf]
    %v709 = vld [vmem:[%s706 + $0x8] sm:$0xf]
    %v710 = vld [vmem:[%s706 + $0xc] sm:$0xf]
    %v715 = vunpack.c.l.b16 %v707
    %v716 = vunpack.c.l.b16 %v708
    %v717 = vunpack.c.l.b16 %v709
    %v718 = vunpack.c.l.b16 %v710
    %v719 = vpack.c.b16 %v716, %v715
    %v720 = vpack.c.b16 %v718, %v717
    %v724 = vsel %vm546, %v704, 0
    %v727 = vsel %vm546, %v705, 0
    %729 = vmatprep.subr.bf16.mxu0 0
    %730 = vmatpush1.bf16.msra.mxu0 %v719
    %731 = vmatprep.subr.bf16.mxu0 0
    %732 = vmatpush1.bf16.msra.mxu0 %v720
    %733 = vmatprep.subr.bf16.mxu0 0
    %734 = vmatpush1.bf16.msra.mxu0 0
    %735 = vmatprep.subr.bf16.mxu0 0
    %736 = vmatpush1.bf16.msra.mxu0 0
    %737 = vmatprep.subr.bf16.mxu0 0
    %738 = vmatpush1.bf16.msra.mxu0 0
    %739 = vmatprep.subr.bf16.mxu0 0
    %740 = vmatpush1.bf16.msra.mxu0 0
    %741 = vmatprep.subr.bf16.mxu0 0
    %742 = vmatpush1.bf16.msra.mxu0 0
    %743 = vmatprep.subr.bf16.mxu0 0
    %744 = vmatpush1.bf16.msra.mxu0 0
    %745 = vmatprep.subr.bf16.mxu0 0
    %746 = vmatpush1.bf16.msra.mxu0 0
    %747 = vmatprep.subr.bf16.mxu0 0
    %748 = vmatpush1.bf16.msra.mxu0 0
    %749 = vmatprep.subr.bf16.mxu0 0
    %750 = vmatpush1.bf16.msra.mxu0 0
    %751 = vmatprep.subr.bf16.mxu0 0
    %752 = vmatpush1.bf16.msra.mxu0 0
    %753 = vmatprep.subr.bf16.mxu0 0
    %754 = vmatpush1.bf16.msra.mxu0 0
    %755 = vmatprep.subr.bf16.mxu0 0
    %756 = vmatpush1.bf16.msra.mxu0 0
    %757 = vmatprep.subr.bf16.mxu0 0
    %758 = vmatpush1.bf16.msra.mxu0 0
    %759 = vmatprep.subr.bf16.mxu0 0
    %760 = vmatpush1.bf16.msra.mxu0 0
    %761 = vmatprep.mubr.bf16.mxu0 0
    %762 = vmatmul.mubr.bf16.gmra.mrb[0].mxu0 %v724
    %v763 = vpop.f32.mrb[0].mxu0
    %v764 = vadd.f32 0.0, %v763
    %v765 = vpop.f32.mrb[0].mxu0
    %v766 = vpop.f32.mrb[0].mxu0
    %v767 = vadd.f32 0.0, %v766
    %v768 = vpop.f32.mrb[0].mxu0
    %769 = vmatprep.mubr.bf16.mxu0 0
    %770 = vmatmul.mubr.bf16.gmra.mrb[0].mxu0 %v727
    %v771 = vpop.f32.mrb[0].mxu0
    %v772 = vadd.f32 0.0, %v771
    %v773 = vpop.f32.mrb[0].mxu0
    %v774 = vpop.f32.mrb[0].mxu0
    %v775 = vadd.f32 0.0, %v774
    %v776 = vpop.f32.mrb[0].mxu0
    %777 = vdwg.mxu0
    %782 = vrot.lane.b32.xlu0 %v764, 64
    %v783 = vpop.permute.xlu0 %782
    %784 = vrot.lane.b32.xlu0 %v767, 64
    %v785 = vpop.permute.xlu0 %784
    %786 = vrot.lane.b32.xlu0 %v772, 64
    %v787 = vpop.permute.xlu0 %786
    %788 = vrot.lane.b32.xlu0 %v775, 64
    %v789 = vpop.permute.xlu0 %788
    %v794 = vadd.f32 %v618, %v783
    %v795 = vadd.f32 %v619, %v785
    %v796 = vadd.f32 %v620, %v787
    %v797 = vadd.f32 %v621, %v789
    %798 = vmatprep.subr.bf16.mxu0 0
    %799 = vmatpush1.bf16.msra.mxu0 %v704
    %800 = vmatprep.subr.bf16.mxu0 0
    %801 = vmatpush1.bf16.msra.mxu0 0
    %802 = vmatprep.subr.bf16.mxu0 0
    %803 = vmatpush1.bf16.msra.mxu0 0
    %804 = vmatprep.subr.bf16.mxu0 0
    %805 = vmatpush1.bf16.msra.mxu0 0
    %806 = vmatprep.subr.bf16.mxu0 0
    %807 = vmatpush1.bf16.msra.mxu0 0
    %808 = vmatprep.subr.bf16.mxu0 0
    %809 = vmatpush1.bf16.msra.mxu0 0
    %810 = vmatprep.subr.bf16.mxu0 0
    %811 = vmatpush1.bf16.msra.mxu0 0
    %812 = vmatprep.subr.bf16.mxu0 0
    %813 = vmatpush1.bf16.msra.mxu0 0
    %814 = vmatprep.subr.bf16.mxu0 0
    %815 = vmatpush1.bf16.msra.mxu0 0
    %816 = vmatprep.subr.bf16.mxu0 0
    %817 = vmatpush1.bf16.msra.mxu0 0
    %818 = vmatprep.subr.bf16.mxu0 0
    %819 = vmatpush1.bf16.msra.mxu0 0
    %820 = vmatprep.subr.bf16.mxu0 0
    %821 = vmatpush1.bf16.msra.mxu0 0
    %822 = vmatprep.subr.bf16.mxu0 0
    %823 = vmatpush1.bf16.msra.mxu0 0
    %824 = vmatprep.subr.bf16.mxu0 0
    %825 = vmatpush1.bf16.msra.mxu0 0
    %826 = vmatprep.subr.bf16.mxu0 0
    %827 = vmatpush1.bf16.msra.mxu0 0
    %828 = vmatprep.subr.bf16.mxu0 0
    %829 = vmatpush1.bf16.msra.mxu0 0
    %830 = vmatprep.mubr.bf16.mxu0 0
    %831 = vmatmul.mubr.bf16.gmra.mrb[0].mxu0 %v156
    %v832 = vpop.f32.mrb[0].mxu0
    %v833 = vadd.f32 0.0, %v832
    %v834 = vpop.f32.mrb[0].mxu0
    %v835 = vpop.f32.mrb[0].mxu0
    %v836 = vadd.f32 0.0, %v835
    %v837 = vpop.f32.mrb[0].mxu0
    %838 = vdwg.mxu0
    %839 = vmatprep.subr.bf16.mxu0 0
    %840 = vmatpush1.bf16.msra.mxu0 %v705
    %841 = vmatprep.subr.bf16.mxu0 0
    %842 = vmatpush1.bf16.msra.mxu0 0
    %843 = vmatprep.subr.bf16.mxu0 0
    %844 = vmatpush1.bf16.msra.mxu0 0
    %845 = vmatprep.subr.bf16.mxu0 0
    %846 = vmatpush1.bf16.msra.mxu0 0
    %847 = vmatprep.subr.bf16.mxu0 0
    %848 = vmatpush1.bf16.msra.mxu0 0
    %849 = vmatprep.subr.bf16.mxu0 0
    %850 = vmatpush1.bf16.msra.mxu0 0
    %851 = vmatprep.subr.bf16.mxu0 0
    %852 = vmatpush1.bf16.msra.mxu0 0
    %853 = vmatprep.subr.bf16.mxu0 0
    %854 = vmatpush1.bf16.msra.mxu0 0
    %855 = vmatprep.subr.bf16.mxu0 0
    %856 = vmatpush1.bf16.msra.mxu0 0
    %857 = vmatprep.subr.bf16.mxu0 0
    %858 = vmatpush1.bf16.msra.mxu0 0
    %859 = vmatprep.subr.bf16.mxu0 0
    %860 = vmatpush1.bf16.msra.mxu0 0
    %861 = vmatprep.subr.bf16.mxu0 0
    %862 = vmatpush1.bf16.msra.mxu0 0
    %863 = vmatprep.subr.bf16.mxu0 0
    %864 = vmatpush1.bf16.msra.mxu0 0
    %865 = vmatprep.subr.bf16.mxu0 0
    %866 = vmatpush1.bf16.msra.mxu0 0
    %867 = vmatprep.subr.bf16.mxu0 0
    %868 = vmatpush1.bf16.msra.mxu0 0
    %869 = vmatprep.subr.bf16.mxu0 0
    %870 = vmatpush1.bf16.msra.mxu0 0
    %871 = vmatprep.mubr.bf16.mxu0 0
    %872 = vmatmul.mubr.bf16.gmra.mrb[0].mxu0 %v156
    %v873 = vpop.f32.mrb[0].mxu0
    %v874 = vadd.f32 0.0, %v873
    %v875 = vpop.f32.mrb[0].mxu0
    %v876 = vpop.f32.mrb[0].mxu0
    %v877 = vadd.f32 0.0, %v876
    %v878 = vpop.f32.mrb[0].mxu0
    %879 = vdwg.mxu0
    %v880 = vmul.f32 %v833, 2.0
    %v881 = vmul.f32 %v836, 2.0
    %v882 = vmul.f32 %v874, 2.0
    %v883 = vmul.f32 %v877, 2.0
    %v884 = vsub.f32 %v880, %v524
    %v885 = vsub.f32 %v881, %v525
    %v886 = vsub.f32 %v882, %v526
    %v887 = vsub.f32 %v883, %v527
    %v888 = vpack.c.bf16 %v885, %v884
    %v889 = vpack.c.bf16 %v887, %v886
    %s890 = scalar_lea.vmem %s4, 32
    %v891 = vld [vmem:[%s890] sm:$0xf]
    %v892 = vld [vmem:[%s890 + $0x4] sm:$0xf]
    %v893 = vld [vmem:[%s890 + $0x8] sm:$0xf]
    %v894 = vld [vmem:[%s890 + $0xc] sm:$0xf]
    %v899 = vunpack.c.l.b16 %v891
    %v900 = vunpack.c.l.b16 %v892
    %v901 = vunpack.c.l.b16 %v893
    %v902 = vunpack.c.l.b16 %v894
    %v903 = vpack.c.b16 %v900, %v899
    %v904 = vpack.c.b16 %v902, %v901
    %v908 = vsel %vm546, %v888, 0
    %v911 = vsel %vm546, %v889, 0
    %913 = vmatprep.subr.bf16.mxu0 0
    %914 = vmatpush1.bf16.msra.mxu0 %v903
    %915 = vmatprep.subr.bf16.mxu0 0
    %916 = vmatpush1.bf16.msra.mxu0 %v904
    %917 = vmatprep.subr.bf16.mxu0 0
    %918 = vmatpush1.bf16.msra.mxu0 0
    %919 = vmatprep.subr.bf16.mxu0 0
    %920 = vmatpush1.bf16.msra.mxu0 0
    %921 = vmatprep.subr.bf16.mxu0 0
    %922 = vmatpush1.bf16.msra.mxu0 0
    %923 = vmatprep.subr.bf16.mxu0 0
    %924 = vmatpush1.bf16.msra.mxu0 0
    %925 = vmatprep.subr.bf16.mxu0 0
    %926 = vmatpush1.bf16.msra.mxu0 0
    %927 = vmatprep.subr.bf16.mxu0 0
    %928 = vmatpush1.bf16.msra.mxu0 0
    %929 = vmatprep.subr.bf16.mxu0 0
    %930 = vmatpush1.bf16.msra.mxu0 0
    %931 = vmatprep.subr.bf16.mxu0 0
    %932 = vmatpush1.bf16.msra.mxu0 0
    %933 = vmatprep.subr.bf16.mxu0 0
    %934 = vmatpush1.bf16.msra.mxu0 0
    %935 = vmatprep.subr.bf16.mxu0 0
    %936 = vmatpush1.bf16.msra.mxu0 0
    %937 = vmatprep.subr.bf16.mxu0 0
    %938 = vmatpush1.bf16.msra.mxu0 0
    %939 = vmatprep.subr.bf16.mxu0 0
    %940 = vmatpush1.bf16.msra.mxu0 0
    %941 = vmatprep.subr.bf16.mxu0 0
    %942 = vmatpush1.bf16.msra.mxu0 0
    %943 = vmatprep.subr.bf16.mxu0 0
    %944 = vmatpush1.bf16.msra.mxu0 0
    %945 = vmatprep.mubr.bf16.mxu0 0
    %946 = vmatmul.mubr.bf16.gmra.mrb[0].mxu0 %v908
    %v947 = vpop.f32.mrb[0].mxu0
    %v948 = vadd.f32 0.0, %v947
    %v949 = vpop.f32.mrb[0].mxu0
    %v950 = vpop.f32.mrb[0].mxu0
    %v951 = vadd.f32 0.0, %v950
    %v952 = vpop.f32.mrb[0].mxu0
    %953 = vmatprep.mubr.bf16.mxu0 0
    %954 = vmatmul.mubr.bf16.gmra.mrb[0].mxu0 %v911
    %v955 = vpop.f32.mrb[0].mxu0
    %v956 = vadd.f32 0.0, %v955
    %v957 = vpop.f32.mrb[0].mxu0
    %v958 = vpop.f32.mrb[0].mxu0
    %v959 = vadd.f32 0.0, %v958
    %v960 = vpop.f32.mrb[0].mxu0
    %961 = vdwg.mxu0
    %966 = vrot.lane.b32.xlu0 %v948, 64
    %v967 = vpop.permute.xlu0 %966
    %968 = vrot.lane.b32.xlu0 %v951, 64
    %v969 = vpop.permute.xlu0 %968
    %970 = vrot.lane.b32.xlu0 %v956, 64
    %v971 = vpop.permute.xlu0 %970
    %972 = vrot.lane.b32.xlu0 %v959, 64
    %v973 = vpop.permute.xlu0 %972
    %v978 = vadd.f32 %v794, %v967
    %v979 = vadd.f32 %v795, %v969
    %v980 = vadd.f32 %v796, %v971
    %v981 = vadd.f32 %v797, %v973
    %v982 = vtanh.pop %v978
    %v983 = vtanh.pop %v979
    %v984 = vtanh.pop %v980
    %v985 = vtanh.pop %v981
    %986 = vrot.lane.b32.xlu0 %v31, 32
    %v987 = vpop.permute.xlu0 %986
    %988 = vrot.lane.b32.xlu0 %v32, 32
    %v989 = vpop.permute.xlu0 %988
    %990 = vrot.lane.b32.xlu0 %v33, 32
    %v991 = vpop.permute.xlu0 %990
    %992 = vrot.lane.b32.xlu0 %v34, 32
    %v993 = vpop.permute.xlu0 %992
    %v998 = vmul.f32 %v517, %v987
    %v999 = vmul.f32 %v519, %v989
    %v1000 = vmul.f32 %v521, %v991
    %v1001 = vmul.f32 %v523, %v993
    %v1002 = vsub.f32 1.0, %v517
    %v1003 = vsub.f32 1.0, %v519
    %v1004 = vsub.f32 1.0, %v521
    %v1005 = vsub.f32 1.0, %v523
    %1010 = vrot.lane.b32.xlu0 %v982, 96
    %v1011 = vpop.permute.xlu0 %1010
    %1012 = vrot.lane.b32.xlu0 %v983, 96
    %v1013 = vpop.permute.xlu0 %1012
    %1014 = vrot.lane.b32.xlu0 %v984, 96
    %v1015 = vpop.permute.xlu0 %1014
    %1016 = vrot.lane.b32.xlu0 %v985, 96
    %v1017 = vpop.permute.xlu0 %1016
    %v1022 = vmul.f32 %v1002, %v1011
    %v1023 = vmul.f32 %v1003, %v1013
    %v1024 = vmul.f32 %v1004, %v1015
    %v1025 = vmul.f32 %v1005, %v1017
    %v1026 = vadd.f32 %v998, %v1022
    %v1027 = vadd.f32 %v999, %v1023
    %v1028 = vadd.f32 %v1000, %v1024
    %v1029 = vadd.f32 %v1001, %v1025
    %1034 = vrot.lane.b32.xlu0 %v1026, 96
    %v1035 = vpop.permute.xlu0 %1034
    %1036 = vrot.lane.b32.xlu0 %v1027, 96
    %v1037 = vpop.permute.xlu0 %1036
    %1038 = vrot.lane.b32.xlu0 %v1028, 96
    %v1039 = vpop.permute.xlu0 %1038
    %1040 = vrot.lane.b32.xlu0 %v1029, 96
    %v1041 = vpop.permute.xlu0 %1040
    %1046 = vst.msk [vmem:[#allocation2] sm:$0xff] %vm546, %v1035
    %1047 = vst.msk [vmem:[#allocation2 + $0x8] sm:$0xff] %vm546, %v1037
    %1048 = vst.msk [vmem:[#allocation2 + $0x10] sm:$0xff] %vm546, %v1039
    %1049 = vst.msk [vmem:[#allocation2 + $0x18] sm:$0xff] %vm546, %v1041
    // Predicated region
    $region26: #{gcrn_cell_pallas.1} parent=1 // pred_check
      _
    $region27: #{gcrn_cell_pallas.1} parent=1 // pred_check_branch
      %1051 = sbr.rel (0) target = $region29
    $region28: #{gcrn_cell_pallas.1} parent=1 // pred_region
      %s1053 = ssub.s32 512, 512
      %1054 = vsyncadd [#allocation3], %s1053
      %s1055 = sshll.u32 [#allocation2], 4
      %s1056 = int_to_ptr.vmem [resolvable:$true] %s1055
      %1061 = dma.vmem_to_hbm [thread:$0]  %s1056, 512, %s6, [#allocation3], 128, 128, 8
    $region29: #{gcrn_cell_pallas.1} parent=1 // pred_fallthru
      _
    // Predicated region
    $region30: #{gcrn_cell_pallas.1} parent=1 // pred_check
      _
    $region31: #{gcrn_cell_pallas.1} parent=1 // pred_check_branch
      %1063 = sbr.rel (0) target = $region33
    $region32: #{gcrn_cell_pallas.1} parent=1 // pred_region
      %1064 = dma.done [#allocation3], 512
    $region33: #{gcrn_cell_pallas.1} parent=1 // pred_fallthru
      _
    %1065 = vsyncpa [#allocation3], 1

</llo_original>
